<compile_context>
chip_gen: v6e
topology: v6e:2x2x1
jax: 0.10.0
libtpu: 0.0.40
codegen_flags: <defaults>
</compile_context>

<pallas_src>
import functools

import jax
import jax.numpy as jnp
from jax import lax
from jax.experimental import pallas as pl
from jax.experimental.pallas import tpu as pltpu


def _resblock_kernel(x_ref, w1_ref, b1_ref, w2_ref, b2_ref, o_ref, *,
                     C, H, W, WPAD, S, LQ, HOFF, PL, neg_slope):
    # x_ref : (1, C, LX)  f32   flat zero-margined padded image (row width WPAD)
    # w1/w2 : (C, 9*C)    bf16  tap-major conv weights, BN scale folded in
    # b1/b2 : (C, 1)      f32   folded BatchNorm shift
    # o_ref : (1, C, S)   f32   result on the padded (H+4, WPAD) grid
    shift = WPAD.bit_length() - 1                         # log2(WPAD), static
    offs = tuple(dy * WPAD + dx for dy in (-1, 0, 1) for dx in (-1, 0, 1))

    def conv3x3(src_bf, w_ref, base, length):
        # One K = 9*C matmul: taps are static lane slices of the flat image,
        # concatenated along the contraction axis.  Output is lane-dense.
        taps = [src_bf[:, base + o: base + o + length] for o in offs]
        xk = jnp.concatenate(taps, axis=0)                # (9*C, length) bf16
        return jnp.dot(w_ref[...], xk, preferred_element_type=jnp.float32)

    xr = x_ref[0]                                         # (C, LX) f32
    xb = xr.astype(jnp.bfloat16)                          # single hoisted cast

    # ---- conv1 + BN1 shift + LeakyReLU over an extended flat range ----------
    g = conv3x3(xb, w1_ref, PL - HOFF, LQ)                # (C, LQ) f32
    g = g + b1_ref[...]
    g = jnp.where(g >= 0.0, g, neg_slope * g)

    # Zero everything outside the image interior (in-kernel iota mask, no DMA):
    # this is exactly the zero padding conv2 needs.
    p = lax.broadcasted_iota(jnp.int32, (C, LQ), 1) - HOFF
    yy = p >> shift                                        # row index (arith shift)
    xx = p & (WPAD - 1)                                    # col index
    keep = (yy >= 2) & (yy < 2 + H) & (xx >= 2) & (xx < 2 + W)
    h = jnp.where(keep, g, 0.0)
    hb = h.astype(jnp.bfloat16)                            # single hoisted cast

    # ---- conv2 + BN2 shift + LeakyReLU over the padded image grid -----------
    y = conv3x3(hb, w2_ref, HOFF, S)                       # (C, S) f32
    y = y + b2_ref[...]
    y = jnp.where(y >= 0.0, y, neg_slope * y)

    # ---- residual add (exact f32 input) + lane-dense store ------------------
    o_ref[0] = (y + xr[:, PL:PL + S]).astype(o_ref.dtype)


def resblock_forward(x_nchw, w1, bn1, w2, bn2, *, eps=1e-5, neg_slope=0.2):
    """Resblock forward (eval-mode BN).

    x_nchw : (B, C, H, W) float32
    w1, w2 : (C, C, 3, 3) torch Conv2d weights (bias=False)
    bn1/bn2: (gamma, beta, running_mean, running_var), each (C,)
    returns (B, C, H, W) float32
    """
    B, C, H, W = x_nchw.shape
    Hp = H + 4                                    # rows after zero-pad by 2
    WPAD = 1 << (W + 4 - 1).bit_length()          # row width padded to power of 2
    S = Hp * WPAD                                 # flat padded-image length
    HOFF = 2 * WPAD                               # left margin of conv1 output
    LQ = S + 2 * HOFF                             # conv1 evaluated flat range
    PL = HOFF + 2 * WPAD                          # left margin of the input
    LX = S + 2 * PL                               # total flat input length

    def fold_bn(bn):
        gamma, beta, mean, var = bn
        scale = gamma / jnp.sqrt(var + eps)
        shift_ = beta - mean * scale
        return scale, shift_.reshape(C, 1).astype(jnp.float32)

    def prep_w(w, scale):
        # (Cout, Cin, 3, 3) -> (Cout, 9*Cin) tap-major (kh, kw, cin), scale folded.
        wk = jnp.transpose(w, (0, 2, 3, 1)).reshape(C, 9 * C)
        return (wk * scale[:, None]).astype(jnp.bfloat16)

    s1, b1 = fold_bn(bn1)
    s2, b2 = fold_bn(bn2)
    w1k = prep_w(w1, s1)
    w2k = prep_w(w2, s2)

    # Zero-pad spatially by 2, pad rows to WPAD, flatten, add flat margins.
    xp = jnp.pad(x_nchw.astype(jnp.float32),
                 ((0, 0), (0, 0), (2, 2), (2, WPAD - W - 2)))   # (B, C, Hp, WPAD)
    xf = xp.reshape(B, C, S)
    xe = jnp.pad(xf, ((0, 0), (0, 0), (PL, LX - PL - S)))       # (B, C, LX)

    kernel = functools.partial(_resblock_kernel, C=C, H=H, W=W, WPAD=WPAD, S=S,
                               LQ=LQ, HOFF=HOFF, PL=PL, neg_slope=neg_slope)

    out_flat = pl.pallas_call(
        kernel,
        out_shape=jax.ShapeDtypeStruct((B, C, S), jnp.float32),
        grid_spec=pltpu.PrefetchScalarGridSpec(
            num_scalar_prefetch=0,
            grid=(B,),                                           # one image / step
            in_specs=[
                pl.BlockSpec((1, C, LX), lambda b: (b, 0, 0)),   # x (flat, margined)
                pl.BlockSpec((C, 9 * C), lambda b: (0, 0)),      # w1 (scale folded)
                pl.BlockSpec((C, 1), lambda b: (0, 0)),          # b1 shift
                pl.BlockSpec((C, 9 * C), lambda b: (0, 0)),      # w2 (scale folded)
                pl.BlockSpec((C, 1), lambda b: (0, 0)),          # b2 shift
            ],
            out_specs=pl.BlockSpec((1, C, S), lambda b: (b, 0, 0)),
        ),
        compiler_params=pltpu.CompilerParams(
            dimension_semantics=("parallel",)),                  # 2nd TC on v7x
    )(xe, w1k, b1, w2k, b2)

    out = out_flat.reshape(B, C, Hp, WPAD)[:, :, 2:2 + H, 2:2 + W]
    return out


def _reference(x, w1, bn1, w2, bn2, eps=1e-5, neg_slope=0.2):
    # Pure-JAX f32 reference of Resblock.forward (eval mode), NCHW.
    def bn(y, p):
        g, b, m, v = p
        inv = 1.0 / jnp.sqrt(v + eps)
        return (y - m[None, :, None, None]) * inv[None, :, None, None] \
            * g[None, :, None, None] + b[None, :, None, None]

    def stage(y, w, p):
        y = lax.conv_general_dilated(
            y, w, window_strides=(1, 1), padding=((1, 1), (1, 1)),
            dimension_numbers=('NCHW', 'OIHW', 'NCHW'))
        y = bn(y, p)
        return jnp.where(y >= 0, y, neg_slope * y)

    return stage(stage(x, w1, bn1), w2, bn2) + x


if __name__ == "__main__":
    B, C, H, W = 2, 4, 16, 16
    key = jax.random.PRNGKey(0)
    ks = jax.random.split(key, 11)

    x = jax.random.normal(ks[0], (B, C, H, W), dtype=jnp.float32)

    # Conv weights: kaiming-uniform-like bound 1/sqrt(fan_in), fan_in = C*3*3.
    bound = 1.0 / jnp.sqrt(jnp.float32(C * 9))
    w1 = jax.random.uniform(ks[1], (C, C, 3, 3), jnp.float32, -bound, bound)
    w2 = jax.random.uniform(ks[2], (C, C, 3, 3), jnp.float32, -bound, bound)

    # BatchNorm (eval) params: near-identity but non-trivial.
    bn1 = (1.0 + 0.1 * jax.random.normal(ks[3], (C,), jnp.float32),
           0.1 * jax.random.normal(ks[4], (C,), jnp.float32),
           0.1 * jax.random.normal(ks[5], (C,), jnp.float32),
           1.0 + 0.1 * jax.random.uniform(ks[6], (C,), jnp.float32))
    bn2 = (1.0 + 0.1 * jax.random.normal(ks[7], (C,), jnp.float32),
           0.1 * jax.random.normal(ks[8], (C,), jnp.float32),
           0.1 * jax.random.normal(ks[9], (C,), jnp.float32),
           1.0 + 0.1 * jax.random.uniform(ks[10], (C,), jnp.float32))

    out = resblock_forward(x, w1, bn1, w2, bn2)
    out = jax.block_until_ready(out)

    ref = _reference(x, w1, bn1, w2, bn2)
    assert out.shape == (B, C, H, W)
    err = float(jnp.max(jnp.abs(out - ref)))
    # Tolerance loosened vs pure f32 because conv matmul operands run in bf16 on
    # the MXU (f32 accumulation, BN scale folded into bf16 weights).
    assert jnp.allclose(out, ref, atol=3e-2, rtol=3e-2), \
        f"mismatch vs reference (max abs err {err})"

    print("KERNEL_OK")
</pallas_src>

<mosaic_0001>
module attributes {stable_mosaic.version = 11 : i64} {
  func.func @_resblock_kernel(%arg0: i32, %arg1: memref<1x4x896xf32, #tpu.memory_space<vmem>>, %arg2: memref<4x36xbf16, #tpu.memory_space<vmem>>, %arg3: memref<4x1xf32, #tpu.memory_space<vmem>>, %arg4: memref<4x36xbf16, #tpu.memory_space<vmem>>, %arg5: memref<4x1xf32, #tpu.memory_space<vmem>>, %arg6: memref<1x4x640xf32, #tpu.memory_space<vmem>>) attributes {dimension_semantics = [#tpu.dimension_semantics<parallel>], iteration_bounds = array<i64: 2>, scalar_prefetch = 0 : i64, scratch_operands = 0 : i64, tpu.core_type = #tpu.core_type<tc>, window_params = [{transform_indices = @transform_0, window_bounds = array<i64: 1, 4, 896>}, {pipeline_mode = #tpu.pipeline_mode<synchronous>, transform_indices = @transform_1, window_bounds = array<i64: 4, 36>}, {pipeline_mode = #tpu.pipeline_mode<synchronous>, transform_indices = @transform_2, window_bounds = array<i64: 4, 1>}, {pipeline_mode = #tpu.pipeline_mode<synchronous>, transform_indices = @transform_3, window_bounds = array<i64: 4, 36>}, {pipeline_mode = #tpu.pipeline_mode<synchronous>, transform_indices = @transform_4, window_bounds = array<i64: 4, 1>}, {transform_indices = @transform_5, window_bounds = array<i64: 1, 4, 640>}]} {
    %c0 = arith.constant 0 : index
    %c0_0 = arith.constant 0 : index
    %c0_1 = arith.constant 0 : index
    %0 = vector.load %arg1[%c0, %c0_0, %c0_1] : memref<1x4x896xf32, #tpu.memory_space<vmem>>, vector<1x4x896xf32>
    %1 = vector.shape_cast %0 : vector<1x4x896xf32> to vector<4x896xf32>
    %2 = arith.truncf %1 : vector<4x896xf32> to vector<4x896xbf16>
    %3 = vector.extract_strided_slice %2 {offsets = [0, 31], sizes = [4, 768], strides = [1, 1]} : vector<4x896xbf16> to vector<4x768xbf16>
    %4 = vector.extract_strided_slice %2 {offsets = [0, 32], sizes = [4, 768], strides = [1, 1]} : vector<4x896xbf16> to vector<4x768xbf16>
    %5 = vector.extract_strided_slice %2 {offsets = [0, 33], sizes = [4, 768], strides = [1, 1]} : vector<4x896xbf16> to vector<4x768xbf16>
    %6 = vector.extract_strided_slice %2 {offsets = [0, 63], sizes = [4, 768], strides = [1, 1]} : vector<4x896xbf16> to vector<4x768xbf16>
    %7 = vector.extract_strided_slice %2 {offsets = [0, 64], sizes = [4, 768], strides = [1, 1]} : vector<4x896xbf16> to vector<4x768xbf16>
    %8 = vector.extract_strided_slice %2 {offsets = [0, 65], sizes = [4, 768], strides = [1, 1]} : vector<4x896xbf16> to vector<4x768xbf16>
    %9 = vector.extract_strided_slice %2 {offsets = [0, 95], sizes = [4, 768], strides = [1, 1]} : vector<4x896xbf16> to vector<4x768xbf16>
    %10 = vector.extract_strided_slice %2 {offsets = [0, 96], sizes = [4, 768], strides = [1, 1]} : vector<4x896xbf16> to vector<4x768xbf16>
    %11 = vector.extract_strided_slice %2 {offsets = [0, 97], sizes = [4, 768], strides = [1, 1]} : vector<4x896xbf16> to vector<4x768xbf16>
    %12 = tpu.concatenate %3, %4, %5, %6, %7, %8, %9, %10, %11 in 0 : vector<4x768xbf16>, vector<4x768xbf16>, vector<4x768xbf16>, vector<4x768xbf16>, vector<4x768xbf16>, vector<4x768xbf16>, vector<4x768xbf16>, vector<4x768xbf16>, vector<4x768xbf16> -> vector<36x768xbf16>
    %c0_2 = arith.constant 0 : index
    %c0_3 = arith.constant 0 : index
    %13 = vector.load %arg2[%c0_2, %c0_3] : memref<4x36xbf16, #tpu.memory_space<vmem>>, vector<4x36xbf16>
    %cst = arith.constant dense<0.000000e+00> : vector<4x768xf32>
    %14 = tpu.matmul %13, %12, %cst {dimension_numbers = #tpu.dot_dimension_numbers<[1], [0], [0], [1], [0, 0, 1, 1], [], []>} : vector<4x36xbf16>, vector<36x768xbf16>, vector<4x768xf32> -> vector<4x768xf32>
    %c0_4 = arith.constant 0 : index
    %c0_5 = arith.constant 0 : index
    %15 = vector.load %arg3[%c0_4, %c0_5] : memref<4x1xf32, #tpu.memory_space<vmem>>, vector<4x1xf32>
    %16 = vector.broadcast %15 : vector<4x1xf32> to vector<4x768xf32>
    %17 = arith.addf %14, %16 : vector<4x768xf32>
    %cst_6 = arith.constant 0.000000e+00 : f32
    %18 = vector.broadcast %cst_6 : f32 to vector<4x768xf32>
    %19 = arith.cmpf oge, %17, %18 : vector<4x768xf32>
    %cst_7 = arith.constant 2.000000e-01 : f32
    %20 = vector.broadcast %cst_7 : f32 to vector<4x768xf32>
    %21 = arith.mulf %20, %17 : vector<4x768xf32>
    %22 = arith.select %19, %17, %21 : vector<4x768xi1>, vector<4x768xf32>
    %23 = tpu.iota {dimensions = array<i32: 1>} : vector<4x768xi32>
    %c64_i32 = arith.constant 64 : i32
    %24 = vector.broadcast %c64_i32 : i32 to vector<4x768xi32>
    %25 = arith.subi %23, %24 : vector<4x768xi32>
    %c5_i32 = arith.constant 5 : i32
    %26 = vector.broadcast %c5_i32 : i32 to vector<4x768xi32>
    %27 = arith.shrsi %25, %26 : vector<4x768xi32>
    %c31_i32 = arith.constant 31 : i32
    %28 = vector.broadcast %c31_i32 : i32 to vector<4x768xi32>
    %29 = arith.andi %25, %28 : vector<4x768xi32>
    %c2_i32 = arith.constant 2 : i32
    %30 = vector.broadcast %c2_i32 : i32 to vector<4x768xi32>
    %31 = arith.cmpi sge, %27, %30 : vector<4x768xi32>
    %c18_i32 = arith.constant 18 : i32
    %32 = vector.broadcast %c18_i32 : i32 to vector<4x768xi32>
    %33 = arith.cmpi slt, %27, %32 : vector<4x768xi32>
    %34 = arith.andi %31, %33 : vector<4x768xi1>
    %c2_i32_8 = arith.constant 2 : i32
    %35 = vector.broadcast %c2_i32_8 : i32 to vector<4x768xi32>
    %36 = arith.cmpi sge, %29, %35 : vector<4x768xi32>
    %37 = arith.andi %34, %36 : vector<4x768xi1>
    %c18_i32_9 = arith.constant 18 : i32
    %38 = vector.broadcast %c18_i32_9 : i32 to vector<4x768xi32>
    %39 = arith.cmpi slt, %29, %38 : vector<4x768xi32>
    %40 = arith.andi %37, %39 : vector<4x768xi1>
    %cst_10 = arith.constant 0.000000e+00 : f32
    %41 = vector.broadcast %cst_10 : f32 to vector<4x768xf32>
    %42 = arith.select %40, %22, %41 : vector<4x768xi1>, vector<4x768xf32>
    %43 = arith.truncf %42 : vector<4x768xf32> to vector<4x768xbf16>
    %44 = vector.extract_strided_slice %43 {offsets = [0, 31], sizes = [4, 640], strides = [1, 1]} : vector<4x768xbf16> to vector<4x640xbf16>
    %45 = vector.extract_strided_slice %43 {offsets = [0, 32], sizes = [4, 640], strides = [1, 1]} : vector<4x768xbf16> to vector<4x640xbf16>
    %46 = vector.extract_strided_slice %43 {offsets = [0, 33], sizes = [4, 640], strides = [1, 1]} : vector<4x768xbf16> to vector<4x640xbf16>
    %47 = vector.extract_strided_slice %43 {offsets = [0, 63], sizes = [4, 640], strides = [1, 1]} : vector<4x768xbf16> to vector<4x640xbf16>
    %48 = vector.extract_strided_slice %43 {offsets = [0, 64], sizes = [4, 640], strides = [1, 1]} : vector<4x768xbf16> to vector<4x640xbf16>
    %49 = vector.extract_strided_slice %43 {offsets = [0, 65], sizes = [4, 640], strides = [1, 1]} : vector<4x768xbf16> to vector<4x640xbf16>
    %50 = vector.extract_strided_slice %43 {offsets = [0, 95], sizes = [4, 640], strides = [1, 1]} : vector<4x768xbf16> to vector<4x640xbf16>
    %51 = vector.extract_strided_slice %43 {offsets = [0, 96], sizes = [4, 640], strides = [1, 1]} : vector<4x768xbf16> to vector<4x640xbf16>
    %52 = vector.extract_strided_slice %43 {offsets = [0, 97], sizes = [4, 640], strides = [1, 1]} : vector<4x768xbf16> to vector<4x640xbf16>
    %53 = tpu.concatenate %44, %45, %46, %47, %48, %49, %50, %51, %52 in 0 : vector<4x640xbf16>, vector<4x640xbf16>, vector<4x640xbf16>, vector<4x640xbf16>, vector<4x640xbf16>, vector<4x640xbf16>, vector<4x640xbf16>, vector<4x640xbf16>, vector<4x640xbf16> -> vector<36x640xbf16>
    %c0_11 = arith.constant 0 : index
    %c0_12 = arith.constant 0 : index
    %54 = vector.load %arg4[%c0_11, %c0_12] : memref<4x36xbf16, #tpu.memory_space<vmem>>, vector<4x36xbf16>
    %cst_13 = arith.constant dense<0.000000e+00> : vector<4x640xf32>
    %55 = tpu.matmul %54, %53, %cst_13 {dimension_numbers = #tpu.dot_dimension_numbers<[1], [0], [0], [1], [0, 0, 1, 1], [], []>} : vector<4x36xbf16>, vector<36x640xbf16>, vector<4x640xf32> -> vector<4x640xf32>
    %c0_14 = arith.constant 0 : index
    %c0_15 = arith.constant 0 : index
    %56 = vector.load %arg5[%c0_14, %c0_15] : memref<4x1xf32, #tpu.memory_space<vmem>>, vector<4x1xf32>
    %57 = vector.broadcast %56 : vector<4x1xf32> to vector<4x640xf32>
    %58 = arith.addf %55, %57 : vector<4x640xf32>
    %cst_16 = arith.constant 0.000000e+00 : f32
    %59 = vector.broadcast %cst_16 : f32 to vector<4x640xf32>
    %60 = arith.cmpf oge, %58, %59 : vector<4x640xf32>
    %cst_17 = arith.constant 2.000000e-01 : f32
    %61 = vector.broadcast %cst_17 : f32 to vector<4x640xf32>
    %62 = arith.mulf %61, %58 : vector<4x640xf32>
    %63 = arith.select %60, %58, %62 : vector<4x640xi1>, vector<4x640xf32>
    %64 = vector.extract_strided_slice %1 {offsets = [0, 128], sizes = [4, 640], strides = [1, 1]} : vector<4x896xf32> to vector<4x640xf32>
    %65 = arith.addf %63, %64 : vector<4x640xf32>
    %c0_18 = arith.constant 0 : index
    %c0_19 = arith.constant 0 : index
    %c0_20 = arith.constant 0 : index
    %66 = vector.load %arg6[%c0_18, %c0_19, %c0_20] : memref<1x4x640xf32, #tpu.memory_space<vmem>>, vector<1x4x640xf32>
    %67 = vector.shape_cast %66 : vector<1x4x640xf32> to vector<4x640xf32>
    %68 = vector.shape_cast %65 : vector<4x640xf32> to vector<1x4x640xf32>
    tpu.vector_store %arg6[%c0_18, %c0_19, %c0_20], %68 {strides = array<i32>} : memref<1x4x640xf32, #tpu.memory_space<vmem>>, vector<1x4x640xf32>,
    return
  }
  func.func @transform_0(%arg0: i32) -> (i32, i32, i32) {
    %c0_i32 = arith.constant 0 : i32
    %c0_i32_0 = arith.constant 0 : i32
    %c0_i32_1 = arith.constant 0 : i32
    return %arg0, %c0_i32, %c0_i32_0 : i32, i32, i32
  }
  func.func @transform_1(%arg0: i32) -> (i32, i32) {
    %c0_i32 = arith.constant 0 : i32
    %c0_i32_0 = arith.constant 0 : i32
    %c0_i32_1 = arith.constant 0 : i32
    return %c0_i32, %c0_i32_0 : i32, i32
  }
  func.func @transform_2(%arg0: i32) -> (i32, i32) {
    %c0_i32 = arith.constant 0 : i32
    %c0_i32_0 = arith.constant 0 : i32
    %c0_i32_1 = arith.constant 0 : i32
    return %c0_i32, %c0_i32_0 : i32, i32
  }
  func.func @transform_3(%arg0: i32) -> (i32, i32) {
    %c0_i32 = arith.constant 0 : i32
    %c0_i32_0 = arith.constant 0 : i32
    %c0_i32_1 = arith.constant 0 : i32
    return %c0_i32, %c0_i32_0 : i32, i32
  }
  func.func @transform_4(%arg0: i32) -> (i32, i32) {
    %c0_i32 = arith.constant 0 : i32
    %c0_i32_0 = arith.constant 0 : i32
    %c0_i32_1 = arith.constant 0 : i32
    return %c0_i32, %c0_i32_0 : i32, i32
  }
  func.func @transform_5(%arg0: i32) -> (i32, i32, i32) {
    %c0_i32 = arith.constant 0 : i32
    %c0_i32_0 = arith.constant 0 : i32
    %c0_i32_1 = arith.constant 0 : i32
    return %arg0, %c0_i32, %c0_i32_0 : i32, i32, i32
  }
}

</mosaic_0001>

<llo_original>
// kernel: tpu_custom_call.1
$region0: #{tpu_custom_call.1}
  #allocation0 [shape = 'u32[]', space=smem, size = 0x4, offset = 0x4, fixed_abs, tag = 'smem constant byte address 0x4 - core index']
  #allocation1 [shape = 'u32[144,128]{1,0:T(1,128)}', space=vmem, size = 0x12000, scoped, tag = 'internal scratch']
  %s0 = inlined_call_operand.hbm [shape: f32[2,4,896], index: 0, kind: input, shape index: {}]
  %s1 = inlined_call_operand.vmem [shape: bf16[4,36], index: 1, kind: input, shape index: {}]
  %s2 = inlined_call_operand.vmem [shape: f32[4,1], index: 2, kind: input, shape index: {}]
  %s3 = inlined_call_operand.vmem [shape: bf16[4,36], index: 3, kind: input, shape index: {}]
  %s4 = inlined_call_operand.vmem [shape: f32[4,1], index: 4, kind: input, shape index: {}]
  %s5 = inlined_call_operand.hbm [shape: f32[2,4,640], index: 5, kind: output, shape index: {}]
  %s6 = sld [smem:[#allocation0]]
  $region57: #{tpu_custom_call.1} parent=0
    _
  %s8 = ssub.s32 1, %s6
  %s9 = scalar_select 0, %s8, %s6
  $region1: #{tpu_custom_call.1} parent=0
    #allocation2 [shape = 'u8[28672]{0}', space=vmem, size = 0x7000, scoped, tag = 'input window, operand 0']
    #allocation3 [shape = 's32[2]{0}', space=sflag, size = 0x8, scoped, tag = 'scoped memory for tpu_custom_call.1']
    #allocation4 [shape = 's32[2]{0}', space=sflag, size = 0x8, scoped, tag = 'scoped memory for tpu_custom_call.1']
    #allocation5 [shape = 'u8[20480]{0}', space=vmem, size = 0x5000, scoped, tag = 'output window, operand 0']
    %10 = vsyncpa [#allocation3], 0
    %s11 = scalar_lea.sflag [#allocation3], 1
    %12 = vsyncpa %s11, 0
    %13 = vsyncpa [#allocation4], 0
    %s14 = scalar_lea.sflag [#allocation4], 1
    %15 = vsyncpa %s14, 0
    loop: start=0, step=1, limit=4
    $region2: #{tpu_custom_call.1} parent=1 // loop_pre_header
      _
    $region3: #{tpu_custom_call.1} parent=1 // loop_header
      %s17 = sphi 0, %s21
      %p18 = scmp.ge.s32.totalorder %s17, 4
      %s27 = sphi 0, %s29
      %s30 = sphi 0, %s27
      %s31 = sphi 0, %s30
      %s47 = sphi 0, %s31
      %s51 = sphi 0, %s51
      %s53 = sphi 0, %s51
      %s54 = sphi 0, %s53
      %s68 = sphi 0, %s54
      %s72 = sphi 0, %s72
      %s74 = sphi 0, %s72
      %s75 = sphi 0, %s74
      %s89 = sphi 0, %s75
      %s93 = sphi 0, %s93
      %s95 = sphi 0, %s93
      %s96 = sphi 0, %s95
      %s110 = sphi 0, %s96
      %s114 = sphi 0, %s114
      %s116 = sphi 0, %s114
      %s117 = sphi 0, %s116
      %s131 = sphi 0, %s117
      %s137 = sphi 0, %s139
      %s140 = sphi 0, %s137
      %s141 = sphi 0, %s140
      %s157 = sphi 0, %s141
    $region4: #{tpu_custom_call.1} parent=1 // loop_header_branch
      %20 = sbr.rel (%p18) target = $region8
    $region5: #{tpu_custom_call.1} parent=1 // loop_body
      %s22 = ssub.s32 %s17, 1
      %s23 = ssub.s32 %s17, 2
      %s24 = sadd.s32 %s17, 1
      %s25 = ssub.s32 %s17, %s24
      %p26 = scmp.eq.s32.totalorder %s25, 0
      %s28 = sadd.s32 %s27, 1
      %s29 = scalar_select %p26, %s27, %s28
      %p32 = pneg %p26
      %p33 = scmp.eq.s32.totalorder %s17, 1
      %p34 = por %p32, %p33
      %p35 = scmp.ne.s32.totalorder %s27, %s30
      %p36 = scmp.eq.s32.totalorder %s17, 0
      %p37 = por %p35, %p36
      %p38 = scmp.ne.s32.totalorder %s27, %s30
      %p39 = scmp.eq.s32.totalorder %s22, 1
      %p40 = por %p38, %p39
      %p41 = scmp.ne.s32.totalorder %s30, %s31
      %p42 = scmp.eq.s32.totalorder %s22, 0
      %p43 = por %p41, %p42
      %p44 = scmp.ne.s32.totalorder %s30, %s31
      %p45 = scmp.eq.s32.totalorder %s23, 1
      %p46 = por %p44, %p45
      %p48 = scmp.ne.s32.totalorder %s31, %s47
      %p49 = scmp.eq.s32.totalorder %s23, 0
      %p50 = por %p48, %p49
      %s52 = sadd.s32 %s51, 1
      %p55 = scmp.eq.s32.totalorder %s17, 1
      %p56 = scmp.ne.s32.totalorder %s51, %s53
      %p57 = scmp.eq.s32.totalorder %s17, 0
      %p58 = por %p56, %p57
      %p59 = scmp.ne.s32.totalorder %s51, %s53
      %p60 = scmp.eq.s32.totalorder %s22, 1
      %p61 = por %p59, %p60
      %p62 = scmp.ne.s32.totalorder %s53, %s54
      %p63 = scmp.eq.s32.totalorder %s22, 0
      %p64 = por %p62, %p63
      %p65 = scmp.ne.s32.totalorder %s53, %s54
      %p66 = scmp.eq.s32.totalorder %s23, 1
      %p67 = por %p65, %p66
      %p69 = scmp.ne.s32.totalorder %s54, %s68
      %p70 = scmp.eq.s32.totalorder %s23, 0
      %p71 = por %p69, %p70
      %s73 = sadd.s32 %s72, 1
      %p76 = scmp.eq.s32.totalorder %s17, 1
      %p77 = scmp.ne.s32.totalorder %s72, %s74
      %p78 = scmp.eq.s32.totalorder %s17, 0
      %p79 = por %p77, %p78
      %p80 = scmp.ne.s32.totalorder %s72, %s74
      %p81 = scmp.eq.s32.totalorder %s22, 1
      %p82 = por %p80, %p81
      %p83 = scmp.ne.s32.totalorder %s74, %s75
      %p84 = scmp.eq.s32.totalorder %s22, 0
      %p85 = por %p83, %p84
      %p86 = scmp.ne.s32.totalorder %s74, %s75
      %p87 = scmp.eq.s32.totalorder %s23, 1
      %p88 = por %p86, %p87
      %p90 = scmp.ne.s32.totalorder %s75, %s89
      %p91 = scmp.eq.s32.totalorder %s23, 0
      %p92 = por %p90, %p91
      %s94 = sadd.s32 %s93, 1
      %p97 = scmp.eq.s32.totalorder %s17, 1
      %p98 = scmp.ne.s32.totalorder %s93, %s95
      %p99 = scmp.eq.s32.totalorder %s17, 0
      %p100 = por %p98, %p99
      %p101 = scmp.ne.s32.totalorder %s93, %s95
      %p102 = scmp.eq.s32.totalorder %s22, 1
      %p103 = por %p101, %p102
      %p104 = scmp.ne.s32.totalorder %s95, %s96
      %p105 = scmp.eq.s32.totalorder %s22, 0
      %p106 = por %p104, %p105
      %p107 = scmp.ne.s32.totalorder %s95, %s96
      %p108 = scmp.eq.s32.totalorder %s23, 1
      %p109 = por %p107, %p108
      %p111 = scmp.ne.s32.totalorder %s96, %s110
      %p112 = scmp.eq.s32.totalorder %s23, 0
      %p113 = por %p111, %p112
      %s115 = sadd.s32 %s114, 1
      %p118 = scmp.eq.s32.totalorder %s17, 1
      %p119 = scmp.ne.s32.totalorder %s114, %s116
      %p120 = scmp.eq.s32.totalorder %s17, 0
      %p121 = por %p119, %p120
      %p122 = scmp.ne.s32.totalorder %s114, %s116
      %p123 = scmp.eq.s32.totalorder %s22, 1
      %p124 = por %p122, %p123
      %p125 = scmp.ne.s32.totalorder %s116, %s117
      %p126 = scmp.eq.s32.totalorder %s22, 0
      %p127 = por %p125, %p126
      %p128 = scmp.ne.s32.totalorder %s116, %s117
      %p129 = scmp.eq.s32.totalorder %s23, 1
      %p130 = por %p128, %p129
      %p132 = scmp.ne.s32.totalorder %s117, %s131
      %p133 = scmp.eq.s32.totalorder %s23, 0
      %p134 = por %p132, %p133
      %s135 = ssub.s32 %s17, %s24
      %p136 = scmp.eq.s32.totalorder %s135, 0
      %s138 = sadd.s32 %s137, 1
      %s139 = scalar_select %p136, %s137, %s138
      %p142 = pneg %p136
      %p143 = scmp.eq.s32.totalorder %s17, 1
      %p144 = por %p142, %p143
      %p145 = scmp.ne.s32.totalorder %s137, %s140
      %p146 = scmp.eq.s32.totalorder %s17, 0
      %p147 = por %p145, %p146
      %p148 = scmp.ne.s32.totalorder %s137, %s140
      %p149 = scmp.eq.s32.totalorder %s22, 1
      %p150 = por %p148, %p149
      %p151 = scmp.ne.s32.totalorder %s140, %s141
      %p152 = scmp.eq.s32.totalorder %s22, 0
      %p153 = por %p151, %p152
      %p154 = scmp.ne.s32.totalorder %s140, %s141
      %p155 = scmp.eq.s32.totalorder %s23, 1
      %p156 = por %p154, %p155
      %p158 = scmp.ne.s32.totalorder %s141, %s157
      %p159 = scmp.eq.s32.totalorder %s23, 0
      %p160 = por %p158, %p159
      %p161 = scmp.le.s32.totalorder 1, %s17
      %p162 = scmp.lt.s32.totalorder %s17, 3
      %p163 = pnand %p161, %p162
      %p164 = pneg %p163
      // Predicated region
      $region9: #{tpu_custom_call.1} parent=5 // pred_check
        _
      $region10: #{tpu_custom_call.1} parent=5 // pred_check_branch
        %166 = sbr.rel (%p163) target = $region12
      $region11: #{tpu_custom_call.1} parent=5 // pred_region
        %s167 = ssub.s32 %s17, 1
        // Predicated region
        $region13: #{tpu_custom_call.1} parent=11 // pred_check
          %p168 = pneg %p64
        $region14: #{tpu_custom_call.1} parent=11 // pred_check_branch
          %170 = sbr.rel (%p168) target = $region16
        $region15: #{tpu_custom_call.1} parent=11 // pred_region
          _
        $region16: #{tpu_custom_call.1} parent=11 // pred_fallthru
          _
        // Predicated region
        $region17: #{tpu_custom_call.1} parent=11 // pred_check
          %p171 = pneg %p85
        $region18: #{tpu_custom_call.1} parent=11 // pred_check_branch
          %173 = sbr.rel (%p171) target = $region20
        $region19: #{tpu_custom_call.1} parent=11 // pred_region
          _
        $region20: #{tpu_custom_call.1} parent=11 // pred_fallthru
          _
        // Predicated region
        $region21: #{tpu_custom_call.1} parent=11 // pred_check
          %p174 = pneg %p106
        $region22: #{tpu_custom_call.1} parent=11 // pred_check_branch
          %176 = sbr.rel (%p174) target = $region24
        $region23: #{tpu_custom_call.1} parent=11 // pred_region
          _
        $region24: #{tpu_custom_call.1} parent=11 // pred_fallthru
          _
        // Predicated region
        $region25: #{tpu_custom_call.1} parent=11 // pred_check
          %p177 = pneg %p127
        $region26: #{tpu_custom_call.1} parent=11 // pred_check_branch
          %179 = sbr.rel (%p177) target = $region28
        $region27: #{tpu_custom_call.1} parent=11 // pred_region
          _
        $region28: #{tpu_custom_call.1} parent=11 // pred_fallthru
          _
      $region12: #{tpu_custom_call.1} parent=5 // pred_fallthru
        _
      %p180 = scmp.lt.s32.totalorder %s17, 2
      // Predicated region
      $region29: #{tpu_custom_call.1} parent=5 // pred_check
        %p181 = pneg %p180
      $region30: #{tpu_custom_call.1} parent=5 // pred_check_branch
        %183 = sbr.rel (%p181) target = $region32
      $region31: #{tpu_custom_call.1} parent=5 // pred_region
        // Predicated region
        $region33: #{tpu_custom_call.1} parent=31 // pred_check
          %p184 = pneg %p37
        $region34: #{tpu_custom_call.1} parent=31 // pred_check_branch
          %186 = sbr.rel (%p184) target = $region36
        $region35: #{tpu_custom_call.1} parent=31 // pred_region
          %s187 = sand.u32 %s27, 1
          %s188 = scalar_lea.sflag [#allocation3], %s187
          %s189 = sand.u32 %s27, 1
          %s190 = smul.addr %s189, 28
          %s191 = scalar_lea.vmem [#allocation2], %s190
          %s193 = ssub.s32 448, 448
          %194 = vsyncadd %s188, %s193
          %s195 = smul.addr %s17, 7
          %s196 = smul.addr %s195, 64
          %s197 = scalar_lea.hbm %s0, %s196
          %s199 = sshll.u32 %s191, 4
          %s200 = int_to_ptr.vmem [resolvable:$true] %s199
          %202 = dma.hbm_to_vmem [thread:$0]  %s197, 448, %s200, %s188
        $region36: #{tpu_custom_call.1} parent=31 // pred_fallthru
          _
      $region32: #{tpu_custom_call.1} parent=5 // pred_fallthru
        _
      %p203 = scmp.le.s32.totalorder 1, %s17
      %p204 = scmp.lt.s32.totalorder %s17, 3
      %p205 = pnand %p203, %p204
      %p206 = pneg %p205
      // Predicated region
      $region37: #{tpu_custom_call.1} parent=5 // pred_check
        _
      $region38: #{tpu_custom_call.1} parent=5 // pred_check_branch
        %208 = sbr.rel (%p205) target = $region40
      $region39: #{tpu_custom_call.1} parent=5 // pred_region
        %s209 = ssub.s32 %s17, 1
        %s210 = sand.u32 %s30, 1
        %s211 = scalar_lea.sflag [#allocation3], %s210
        %s212 = sand.u32 %s30, 1
        %s213 = smul.addr %s212, 28
        %s214 = scalar_lea.vmem [#allocation2], %s213
        // Predicated region
        $region41: #{tpu_custom_call.1} parent=39 // pred_check
          %p215 = pneg %p43
        $region42: #{tpu_custom_call.1} parent=39 // pred_check_branch
          %217 = sbr.rel (%p215) target = $region44
        $region43: #{tpu_custom_call.1} parent=39 // pred_region
          %218 = dma.done %s211, 448
        $region44: #{tpu_custom_call.1} parent=39 // pred_fallthru
          _
        %s219 = sand.u32 %s30, 1
        %s220 = scalar_lea.sflag [#allocation3], %s219
        %s221 = sand.u32 %s30, 1
        %s222 = smul.addr %s221, 28
        %s223 = scalar_lea.vmem [#allocation2], %s222
        %p224 = pneg %p43
        %p225 = pneg %p40
        %p226 = pneg %p64
        %p227 = pneg %p61
        %p228 = pneg %p85
        %p229 = pneg %p82
        %p230 = pneg %p106
        %p231 = pneg %p103
        %p232 = pneg %p127
        %p233 = pneg %p124
        %p234 = pneg %p153
        %p235 = pneg %p150
        %s236 = sand.u32 %s140, 1
        %s237 = scalar_lea.sflag [#allocation4], %s236
        %s238 = sand.u32 %s140, 1
        %s239 = smul.addr %s238, 20
        %s240 = scalar_lea.vmem [#allocation5], %s239
        %v242 = vld [vmem:[%s214] sm:$0xff]
        %v243 = vld [vmem:[%s214 + $0x8] sm:$0xff]
        %v244 = vld [vmem:[%s214 + $0x10] sm:$0xff]
        %v245 = vld [vmem:[%s214 + $0x18] sm:$0xf]
        %v249 = vcombine.high %v242, %v242
        %v250 = vcombine.high %v243, %v243
        %v251 = vcombine.high %v244, %v244
        %v255 = vpack.c.bf16 %v242, %v242
        %v256 = vpack.c.bf16 %v249, %v249
        %v257 = vpack.c.bf16 %v243, %v243
        %v258 = vpack.c.bf16 %v250, %v250
        %v259 = vpack.c.bf16 %v244, %v244
        %v260 = vpack.c.bf16 %v251, %v251
        %v261 = vpack.c.bf16 %v245, %v245
        %v269 = vrot.slane %v255, 6
        %v270 = vrot.slane %v256, 6
        %v271 = vrot.slane %v257, 6
        %v272 = vrot.slane %v258, 6
        %v273 = vrot.slane %v259, 6
        %v274 = vrot.slane %v260, 6
        %v275 = vrot.slane %v261, 6
        %276 = vrot.lane.b32.xlu0 %v269, 127
        %v277 = vpop.permute.xlu0 %276
        %278 = vrot.lane.b32.xlu0 %v270, 127
        %v279 = vpop.permute.xlu0 %278
        %280 = vrot.lane.b32.xlu0 %v271, 127
        %v281 = vpop.permute.xlu0 %280
        %282 = vrot.lane.b32.xlu0 %v272, 127
        %v283 = vpop.permute.xlu0 %282
        %284 = vrot.lane.b32.xlu0 %v273, 127
        %v285 = vpop.permute.xlu0 %284
        %286 = vrot.lane.b32.xlu0 %v274, 127
        %v287 = vpop.permute.xlu0 %286
        %288 = vrot.lane.b32.xlu0 %v275, 127
        %v289 = vpop.permute.xlu0 %288
        %vm290 = vcmask 1039360
        %v291 = vsel %vm290, %v277, %v279
        %v292 = vsel %vm290, %v279, %v281
        %v293 = vsel %vm290, %v281, %v283
        %v294 = vsel %vm290, %v283, %v285
        %v295 = vsel %vm290, %v285, %v287
        %v296 = vsel %vm290, %v287, %v289
        %v297 = vrot.slane %v255, 4
        %v298 = vrot.slane %v256, 4
        %v299 = vrot.slane %v257, 4
        %v300 = vrot.slane %v258, 4
        %v301 = vrot.slane %v259, 4
        %v302 = vrot.slane %v260, 4
        %v303 = vrot.slane %v261, 4
        %304 = vrot.lane.b32.xlu0 %v297, 126
        %v305 = vpop.permute.xlu0 %304
        %306 = vrot.lane.b32.xlu0 %v298, 126
        %v307 = vpop.permute.xlu0 %306
        %308 = vrot.lane.b32.xlu0 %v299, 126
        %v309 = vpop.permute.xlu0 %308
        %310 = vrot.lane.b32.xlu0 %v300, 126
        %v311 = vpop.permute.xlu0 %310
        %312 = vrot.lane.b32.xlu0 %v301, 126
        %v313 = vpop.permute.xlu0 %312
        %314 = vrot.lane.b32.xlu0 %v302, 126
        %v315 = vpop.permute.xlu0 %314
        %316 = vrot.lane.b32.xlu0 %v303, 126
        %v317 = vpop.permute.xlu0 %316
        %vm318 = vcmask 1031168
        %v319 = vsel %vm318, %v305, %v307
        %v320 = vsel %vm318, %v307, %v309
        %v321 = vsel %vm318, %v309, %v311
        %v322 = vsel %vm318, %v311, %v313
        %v323 = vsel %vm318, %v313, %v315
        %v324 = vsel %vm318, %v315, %v317
        %v325 = vrot.slane %v255, 2
        %v326 = vrot.slane %v256, 2
        %v327 = vrot.slane %v257, 2
        %v328 = vrot.slane %v258, 2
        %v329 = vrot.slane %v259, 2
        %v330 = vrot.slane %v260, 2
        %v331 = vrot.slane %v261, 2
        %332 = vrot.lane.b32.xlu0 %v325, 96
        %v333 = vpop.permute.xlu0 %332
        %334 = vrot.lane.b32.xlu0 %v326, 96
        %v335 = vpop.permute.xlu0 %334
        %336 = vrot.lane.b32.xlu0 %v327, 96
        %v337 = vpop.permute.xlu0 %336
        %338 = vrot.lane.b32.xlu0 %v328, 96
        %v339 = vpop.permute.xlu0 %338
        %340 = vrot.lane.b32.xlu0 %v329, 96
        %v341 = vpop.permute.xlu0 %340
        %342 = vrot.lane.b32.xlu0 %v330, 96
        %v343 = vpop.permute.xlu0 %342
        %344 = vrot.lane.b32.xlu0 %v331, 96
        %v345 = vpop.permute.xlu0 %344
        %vm346 = vcmask 785408
        %v347 = vsel %vm346, %v333, %v335
        %v348 = vsel %vm346, %v335, %v337
        %v349 = vsel %vm346, %v337, %v339
        %v350 = vsel %vm346, %v339, %v341
        %v351 = vsel %vm346, %v341, %v343
        %v352 = vsel %vm346, %v343, %v345
        %353 = vrot.lane.b32.xlu0 %v255, 95
        %v354 = vpop.permute.xlu0 %353
        %355 = vrot.lane.b32.xlu0 %v256, 95
        %v356 = vpop.permute.xlu0 %355
        %357 = vrot.lane.b32.xlu0 %v257, 95
        %v358 = vpop.permute.xlu0 %357
        %359 = vrot.lane.b32.xlu0 %v258, 95
        %v360 = vpop.permute.xlu0 %359
        %361 = vrot.lane.b32.xlu0 %v259, 95
        %v362 = vpop.permute.xlu0 %361
        %363 = vrot.lane.b32.xlu0 %v260, 95
        %v364 = vpop.permute.xlu0 %363
        %365 = vrot.lane.b32.xlu0 %v261, 95
        %v366 = vpop.permute.xlu0 %365
        %vm367 = vcmask 777216
        %v368 = vsel %vm367, %v354, %v356
        %v369 = vsel %vm367, %v356, %v358
        %v370 = vsel %vm367, %v358, %v360
        %v371 = vsel %vm367, %v360, %v362
        %v372 = vsel %vm367, %v362, %v364
        %v373 = vsel %vm367, %v364, %v366
        %374 = vrot.lane.b32.xlu0 %v269, 94
        %v375 = vpop.permute.xlu0 %374
        %376 = vrot.lane.b32.xlu0 %v270, 94
        %v377 = vpop.permute.xlu0 %376
        %378 = vrot.lane.b32.xlu0 %v271, 94
        %v379 = vpop.permute.xlu0 %378
        %380 = vrot.lane.b32.xlu0 %v272, 94
        %v381 = vpop.permute.xlu0 %380
        %382 = vrot.lane.b32.xlu0 %v273, 94
        %v383 = vpop.permute.xlu0 %382
        %384 = vrot.lane.b32.xlu0 %v274, 94
        %v385 = vpop.permute.xlu0 %384
        %386 = vrot.lane.b32.xlu0 %v275, 94
        %v387 = vpop.permute.xlu0 %386
        %vm388 = vcmask 769024
        %v389 = vsel %vm388, %v375, %v377
        %v390 = vsel %vm388, %v377, %v379
        %v391 = vsel %vm388, %v379, %v381
        %v392 = vsel %vm388, %v381, %v383
        %v393 = vsel %vm388, %v383, %v385
        %v394 = vsel %vm388, %v385, %v387
        %395 = vrot.lane.b32.xlu0 %v297, 64
        %v396 = vpop.permute.xlu0 %395
        %397 = vrot.lane.b32.xlu0 %v298, 64
        %v398 = vpop.permute.xlu0 %397
        %399 = vrot.lane.b32.xlu0 %v299, 64
        %v400 = vpop.permute.xlu0 %399
        %401 = vrot.lane.b32.xlu0 %v300, 64
        %v402 = vpop.permute.xlu0 %401
        %403 = vrot.lane.b32.xlu0 %v301, 64
        %v404 = vpop.permute.xlu0 %403
        %405 = vrot.lane.b32.xlu0 %v302, 64
        %v406 = vpop.permute.xlu0 %405
        %407 = vrot.lane.b32.xlu0 %v303, 64
        %v408 = vpop.permute.xlu0 %407
        %vm409 = vcmask 523264
        %v410 = vsel %vm409, %v396, %v398
        %v411 = vsel %vm409, %v398, %v400
        %v412 = vsel %vm409, %v400, %v402
        %v413 = vsel %vm409, %v402, %v404
        %v414 = vsel %vm409, %v404, %v406
        %v415 = vsel %vm409, %v406, %v408
        %416 = vrot.lane.b32.xlu0 %v325, 63
        %v417 = vpop.permute.xlu0 %416
        %418 = vrot.lane.b32.xlu0 %v326, 63
        %v419 = vpop.permute.xlu0 %418
        %420 = vrot.lane.b32.xlu0 %v327, 63
        %v421 = vpop.permute.xlu0 %420
        %422 = vrot.lane.b32.xlu0 %v328, 63
        %v423 = vpop.permute.xlu0 %422
        %424 = vrot.lane.b32.xlu0 %v329, 63
        %v425 = vpop.permute.xlu0 %424
        %426 = vrot.lane.b32.xlu0 %v330, 63
        %v427 = vpop.permute.xlu0 %426
        %428 = vrot.lane.b32.xlu0 %v331, 63
        %v429 = vpop.permute.xlu0 %428
        %vm430 = vcmask 515072
        %v431 = vsel %vm430, %v417, %v419
        %v432 = vsel %vm430, %v419, %v421
        %v433 = vsel %vm430, %v421, %v423
        %v434 = vsel %vm430, %v423, %v425
        %v435 = vsel %vm430, %v425, %v427
        %v436 = vsel %vm430, %v427, %v429
        %437 = vrot.lane.b32.xlu0 %v255, 62
        %v438 = vpop.permute.xlu0 %437
        %439 = vrot.lane.b32.xlu0 %v256, 62
        %v440 = vpop.permute.xlu0 %439
        %441 = vrot.lane.b32.xlu0 %v257, 62
        %v442 = vpop.permute.xlu0 %441
        %443 = vrot.lane.b32.xlu0 %v258, 62
        %v444 = vpop.permute.xlu0 %443
        %445 = vrot.lane.b32.xlu0 %v259, 62
        %v446 = vpop.permute.xlu0 %445
        %447 = vrot.lane.b32.xlu0 %v260, 62
        %v448 = vpop.permute.xlu0 %447
        %449 = vrot.lane.b32.xlu0 %v261, 62
        %v450 = vpop.permute.xlu0 %449
        %vm451 = vcmask 506880
        %v452 = vsel %vm451, %v438, %v440
        %v453 = vsel %vm451, %v440, %v442
        %v454 = vsel %vm451, %v442, %v444
        %v455 = vsel %vm451, %v444, %v446
        %v456 = vsel %vm451, %v446, %v448
        %v457 = vsel %vm451, %v448, %v450
        %vm458 = vcmask 1041408
        %v461 = vsel %vm458, %v255, %v291
        %v464 = vsel %vm458, %v256, %v292
        %v467 = vsel %vm458, %v257, %v293
        %v470 = vsel %vm458, %v258, %v294
        %v473 = vsel %vm458, %v259, %v295
        %v476 = vsel %vm458, %v260, %v296
        %v479 = vsel %vm458, %v261, %v289
        %vm480 = vcmask 1043456
        %v482 = vsel %vm480, %v461, %v319
        %v484 = vsel %vm480, %v464, %v320
        %v486 = vsel %vm480, %v467, %v321
        %v488 = vsel %vm480, %v470, %v322
        %v490 = vsel %vm480, %v473, %v323
        %v492 = vsel %vm480, %v476, %v324
        %v494 = vsel %vm480, %v479, %v317
        %vm495 = vcmask 1045504
        %v497 = vsel %vm495, %v482, %v347
        %v499 = vsel %vm495, %v484, %v348
        %v501 = vsel %vm495, %v486, %v349
        %v503 = vsel %vm495, %v488, %v350
        %v505 = vsel %vm495, %v490, %v351
        %v507 = vsel %vm495, %v492, %v352
        %v509 = vsel %vm495, %v494, %v345
        %v512 = vsel %vm458, %v368, %v389
        %v515 = vsel %vm458, %v369, %v390
        %v518 = vsel %vm458, %v370, %v391
        %v521 = vsel %vm458, %v371, %v392
        %v524 = vsel %vm458, %v372, %v393
        %v527 = vsel %vm458, %v373, %v394
        %v530 = vsel %vm458, %v366, %v387
        %v532 = vsel %vm480, %v512, %v410
        %v534 = vsel %vm480, %v515, %v411
        %v536 = vsel %vm480, %v518, %v412
        %v538 = vsel %vm480, %v521, %v413
        %v540 = vsel %vm480, %v524, %v414
        %v542 = vsel %vm480, %v527, %v415
        %v544 = vsel %vm480, %v530, %v408
        %v546 = vsel %vm495, %v532, %v431
        %v548 = vsel %vm495, %v534, %v432
        %v550 = vsel %vm495, %v536, %v433
        %v552 = vsel %vm495, %v538, %v434
        %v554 = vsel %vm495, %v540, %v435
        %v556 = vsel %vm495, %v542, %v436
        %v558 = vsel %vm495, %v544, %v429
        %v559 = vld [vmem:[%s1] sm:$0x3]
        %v560 = vld [vmem:[%s2] sm:$0xf]
        %562 = vset.pattern.permute.xlu0 0
        %563 = vperm.xlu0 %562, %v560
        %v564 = vpop.permute.xlu0 %563
        %580 = vrot.lane.b32.xlu0 %v497, 97
        %v581 = vpop.permute.xlu0 %580
        %582 = vrot.lane.b32.xlu0 %v499, 97
        %v583 = vpop.permute.xlu0 %582
        %584 = vrot.lane.b32.xlu0 %v501, 97
        %v585 = vpop.permute.xlu0 %584
        %586 = vrot.lane.b32.xlu0 %v503, 97
        %v587 = vpop.permute.xlu0 %586
        %588 = vrot.lane.b32.xlu0 %v505, 97
        %v589 = vpop.permute.xlu0 %588
        %590 = vrot.lane.b32.xlu0 %v507, 97
        %v591 = vpop.permute.xlu0 %590
        %592 = vrot.lane.b32.xlu0 %v509, 97
        %v593 = vpop.permute.xlu0 %592
        %594 = vrot.lane.b32.xlu0 %v546, 97
        %v595 = vpop.permute.xlu0 %594
        %596 = vrot.lane.b32.xlu0 %v548, 97
        %v597 = vpop.permute.xlu0 %596
        %598 = vrot.lane.b32.xlu0 %v550, 97
        %v599 = vpop.permute.xlu0 %598
        %600 = vrot.lane.b32.xlu0 %v552, 97
        %v601 = vpop.permute.xlu0 %600
        %602 = vrot.lane.b32.xlu0 %v554, 97
        %v603 = vpop.permute.xlu0 %602
        %604 = vrot.lane.b32.xlu0 %v556, 97
        %v605 = vpop.permute.xlu0 %604
        %606 = vrot.lane.b32.xlu0 %v558, 97
        %v607 = vpop.permute.xlu0 %606
        %608 = vrot.lane.b32.xlu0 %v452, 97
        %v609 = vpop.permute.xlu0 %608
        %610 = vrot.lane.b32.xlu0 %v453, 97
        %v611 = vpop.permute.xlu0 %610
        %612 = vrot.lane.b32.xlu0 %v454, 97
        %v613 = vpop.permute.xlu0 %612
        %614 = vrot.lane.b32.xlu0 %v455, 97
        %v615 = vpop.permute.xlu0 %614
        %616 = vrot.lane.b32.xlu0 %v456, 97
        %v617 = vpop.permute.xlu0 %616
        %618 = vrot.lane.b32.xlu0 %v457, 97
        %v619 = vpop.permute.xlu0 %618
        %620 = vrot.lane.b32.xlu0 %v450, 97
        %v621 = vpop.permute.xlu0 %620
        %vm622 = vcmask 793600
        %v623 = vsel %vm622, %v581, %v583
        %v624 = vsel %vm622, %v583, %v585
        %v625 = vsel %vm622, %v585, %v587
        %v626 = vsel %vm622, %v587, %v589
        %v627 = vsel %vm622, %v589, %v591
        %v628 = vsel %vm622, %v591, %v593
        %v629 = vsel %vm622, %v595, %v597
        %v630 = vsel %vm622, %v597, %v599
        %v631 = vsel %vm622, %v599, %v601
        %v632 = vsel %vm622, %v601, %v603
        %v633 = vsel %vm622, %v603, %v605
        %v634 = vsel %vm622, %v605, %v607
        %v635 = vsel %vm622, %v609, %v611
        %v636 = vsel %vm622, %v611, %v613
        %v637 = vsel %vm622, %v613, %v615
        %v638 = vsel %vm622, %v615, %v617
        %v639 = vsel %vm622, %v617, %v619
        %v640 = vsel %vm622, %v619, %v621
        %vm653 = vcmask 293888
        %v655 = vsel %vm653, %v559, 0
        %v658 = vsel %vm458, %v635, 0
        %v661 = vsel %vm458, %v636, 0
        %v664 = vsel %vm458, %v637, 0
        %v667 = vsel %vm458, %v638, 0
        %v670 = vsel %vm458, %v639, 0
        %v673 = vsel %vm458, %v640, 0
        %675 = vmatprep.subr.bf16.mxu0 0
        %676 = vmatpush1.bf16.msra.mxu0 0
        %677 = vmatprep.subr.bf16.mxu0 0
        %678 = vmatpush1.bf16.msra.mxu0 0
        %679 = vmatprep.subr.bf16.mxu0 0
        %680 = vmatpush1.bf16.msra.mxu0 0
        %681 = vmatprep.subr.bf16.mxu0 0
        %682 = vmatpush1.bf16.msra.mxu0 0
        %683 = vmatprep.subr.bf16.mxu0 0
        %684 = vmatpush1.bf16.msra.mxu0 0
        %685 = vmatprep.subr.bf16.mxu0 %v661
        %686 = vmatpush1.bf16.msra.mxu0 %v658
        %687 = vmatprep.subr.bf16.mxu0 %v630
        %688 = vmatpush1.bf16.msra.mxu0 %v629
        %689 = vmatprep.subr.bf16.mxu0 %v624
        %690 = vmatpush1.bf16.msra.mxu0 %v623
        %691 = vmatprep.subr.bf16.mxu0 0
        %692 = vmatpush2.bf16.msra.mxu0 0
        %693 = vmatprep.subr.bf16.mxu0 0
        %694 = vmatpush2.bf16.msra.mxu0 0
        %695 = vmatprep.subr.bf16.mxu0 0
        %696 = vmatpush2.bf16.msra.mxu0 0
        %697 = vmatprep.subr.bf16.mxu0 0
        %698 = vmatpush2.bf16.msra.mxu0 0
        %699 = vmatprep.subr.bf16.mxu0 0
        %700 = vmatpush2.bf16.msra.mxu0 0
        %701 = vmatprep.subr.bf16.mxu0 0
        %702 = vmatpush2.bf16.msra.mxu0 0
        %703 = vmatprep.subr.bf16.mxu0 0
        %704 = vmatpush2.bf16.msra.mxu0 0
        %705 = vmatprep.subr.bf16.mxu0 0
        %706 = vmatpush2.bf16.msra.mxu0 0
        %707 = vmatprep.mubr.bf16.mxu0 0
        %708 = vmatmul.mubr.bf16.gmra.mxu0 %v655
        %v709 = vpop.f32.mrf.mxu0
        %v710 = vadd.f32 %v564, %v709
        %v711 = vpop.f32.mrf.mxu0
        %v712 = vadd.f32 %v564, %v711
        %v713 = vpop.f32.mrf.mxu0
        %v714 = vpop.f32.mrf.mxu0
        %715 = vdwg.mxu0
        %716 = vmatprep.subr.bf16.mxu0 0
        %717 = vmatpush1.bf16.msra.mxu0 0
        %718 = vmatprep.subr.bf16.mxu0 0
        %719 = vmatpush1.bf16.msra.mxu0 0
        %720 = vmatprep.subr.bf16.mxu0 0
        %721 = vmatpush1.bf16.msra.mxu0 0
        %722 = vmatprep.subr.bf16.mxu0 0
        %723 = vmatpush1.bf16.msra.mxu0 0
        %724 = vmatprep.subr.bf16.mxu0 0
        %725 = vmatpush1.bf16.msra.mxu0 0
        %726 = vmatprep.subr.bf16.mxu0 %v667
        %727 = vmatpush1.bf16.msra.mxu0 %v664
        %728 = vmatprep.subr.bf16.mxu0 %v632
        %729 = vmatpush1.bf16.msra.mxu0 %v631
        %730 = vmatprep.subr.bf16.mxu0 %v626
        %731 = vmatpush1.bf16.msra.mxu0 %v625
        %732 = vmatprep.subr.bf16.mxu0 0
        %733 = vmatpush2.bf16.msra.mxu0 0
        %734 = vmatprep.subr.bf16.mxu0 0
        %735 = vmatpush2.bf16.msra.mxu0 0
        %736 = vmatprep.subr.bf16.mxu0 0
        %737 = vmatpush2.bf16.msra.mxu0 0
        %738 = vmatprep.subr.bf16.mxu0 0
        %739 = vmatpush2.bf16.msra.mxu0 0
        %740 = vmatprep.subr.bf16.mxu0 0
        %741 = vmatpush2.bf16.msra.mxu0 0
        %742 = vmatprep.subr.bf16.mxu0 0
        %743 = vmatpush2.bf16.msra.mxu0 0
        %744 = vmatprep.subr.bf16.mxu0 0
        %745 = vmatpush2.bf16.msra.mxu0 0
        %746 = vmatprep.subr.bf16.mxu0 0
        %747 = vmatpush2.bf16.msra.mxu0 0
        %748 = vmatprep.mubr.bf16.mxu0 0
        %749 = vmatmul.mubr.bf16.gmra.mxu0 %v655
        %v750 = vpop.f32.mrf.mxu0
        %v751 = vadd.f32 %v564, %v750
        %v752 = vpop.f32.mrf.mxu0
        %v753 = vadd.f32 %v564, %v752
        %v754 = vpop.f32.mrf.mxu0
        %v755 = vpop.f32.mrf.mxu0
        %756 = vdwg.mxu0
        %757 = vmatprep.subr.bf16.mxu0 0
        %758 = vmatpush1.bf16.msra.mxu0 0
        %759 = vmatprep.subr.bf16.mxu0 0
        %760 = vmatpush1.bf16.msra.mxu0 0
        %761 = vmatprep.subr.bf16.mxu0 0
        %762 = vmatpush1.bf16.msra.mxu0 0
        %763 = vmatprep.subr.bf16.mxu0 0
        %764 = vmatpush1.bf16.msra.mxu0 0
        %765 = vmatprep.subr.bf16.mxu0 0
        %766 = vmatpush1.bf16.msra.mxu0 0
        %767 = vmatprep.subr.bf16.mxu0 %v673
        %768 = vmatpush1.bf16.msra.mxu0 %v670
        %769 = vmatprep.subr.bf16.mxu0 %v634
        %770 = vmatpush1.bf16.msra.mxu0 %v633
        %771 = vmatprep.subr.bf16.mxu0 %v628
        %772 = vmatpush1.bf16.msra.mxu0 %v627
        %773 = vmatprep.subr.bf16.mxu0 0
        %774 = vmatpush2.bf16.msra.mxu0 0
        %775 = vmatprep.subr.bf16.mxu0 0
        %776 = vmatpush2.bf16.msra.mxu0 0
        %777 = vmatprep.subr.bf16.mxu0 0
        %778 = vmatpush2.bf16.msra.mxu0 0
        %779 = vmatprep.subr.bf16.mxu0 0
        %780 = vmatpush2.bf16.msra.mxu0 0
        %781 = vmatprep.subr.bf16.mxu0 0
        %782 = vmatpush2.bf16.msra.mxu0 0
        %783 = vmatprep.subr.bf16.mxu0 0
        %784 = vmatpush2.bf16.msra.mxu0 0
        %785 = vmatprep.subr.bf16.mxu0 0
        %786 = vmatpush2.bf16.msra.mxu0 0
        %787 = vmatprep.subr.bf16.mxu0 0
        %788 = vmatpush2.bf16.msra.mxu0 0
        %789 = vmatprep.mubr.bf16.mxu0 0
        %790 = vmatmul.mubr.bf16.gmra.mxu0 %v655
        %v791 = vpop.f32.mrf.mxu0
        %v792 = vadd.f32 %v564, %v791
        %v793 = vpop.f32.mrf.mxu0
        %v794 = vadd.f32 %v564, %v793
        %v795 = vpop.f32.mrf.mxu0
        %v796 = vpop.f32.mrf.mxu0
        %797 = vdwg.mxu0
        %vm798 = vcmp.ge.f32.partialorder %v710, 0.0
        %vm799 = vcmp.ge.f32.partialorder %v712, 0.0
        %vm800 = vcmp.ge.f32.partialorder %v751, 0.0
        %vm801 = vcmp.ge.f32.partialorder %v753, 0.0
        %vm802 = vcmp.ge.f32.partialorder %v792, 0.0
        %vm803 = vcmp.ge.f32.partialorder %v794, 0.0
        %v804 = vmul.f32 %v710, 0.2
        %v805 = vmul.f32 %v712, 0.2
        %v806 = vmul.f32 %v751, 0.2
        %v807 = vmul.f32 %v753, 0.2
        %v808 = vmul.f32 %v792, 0.2
        %v809 = vmul.f32 %v794, 0.2
        %v810 = vsel %vm798, %v710, %v804
        %v811 = vsel %vm799, %v712, %v805
        %v812 = vsel %vm800, %v751, %v806
        %v813 = vsel %vm801, %v753, %v807
        %v814 = vsel %vm802, %v792, %v808
        %v815 = vsel %vm803, %v794, %v809
        %v816 = vlaneseq
        %v817 = vand.u32 %v816, 127
        %v818 = vadd.s32 %v817, 128
        %v819 = vadd.s32 %v817, 256
        %v820 = vadd.s32 %v817, 384
        %v821 = vadd.s32 %v817, 512
        %v822 = vadd.s32 %v817, 640
        %v823 = vsub.s32 %v817, 64
        %v824 = vsub.s32 %v818, 64
        %v825 = vsub.s32 %v819, 64
        %v826 = vsub.s32 %v820, 64
        %v827 = vsub.s32 %v821, 64
        %v828 = vsub.s32 %v822, 64
        %v829 = vshra.s32 %v823, 5
        %v830 = vshra.s32 %v824, 5
        %v831 = vshra.s32 %v825, 5
        %v832 = vshra.s32 %v826, 5
        %v833 = vshra.s32 %v827, 5
        %v834 = vshra.s32 %v828, 5
        %v835 = vand.u32 %v823, 31
        %v836 = vand.u32 %v824, 31
        %v837 = vand.u32 %v825, 31
        %v838 = vand.u32 %v826, 31
        %v839 = vand.u32 %v827, 31
        %v840 = vand.u32 %v828, 31
        %vm841 = vcmp.ge.s32.totalorder %v829, 2
        %vm842 = vcmp.ge.s32.totalorder %v830, 2
        %vm843 = vcmp.ge.s32.totalorder %v831, 2
        %vm844 = vcmp.ge.s32.totalorder %v832, 2
        %vm845 = vcmp.ge.s32.totalorder %v833, 2
        %vm846 = vcmp.ge.s32.totalorder %v834, 2
        %vm847 = vcmp.lt.s32.totalorder %v829, 18
        %vm848 = vcmp.lt.s32.totalorder %v830, 18
        %vm849 = vcmp.lt.s32.totalorder %v831, 18
        %vm850 = vcmp.lt.s32.totalorder %v832, 18
        %vm851 = vcmp.lt.s32.totalorder %v833, 18
        %vm852 = vcmp.lt.s32.totalorder %v834, 18
        %vm853 = vmand %vm841, %vm847
        %vm854 = vmand %vm842, %vm848
        %vm855 = vmand %vm843, %vm849
        %vm856 = vmand %vm844, %vm850
        %vm857 = vmand %vm845, %vm851
        %vm858 = vmand %vm846, %vm852
        %vm859 = vcmp.ge.s32.totalorder %v835, 2
        %vm860 = vcmp.ge.s32.totalorder %v836, 2
        %vm861 = vcmp.ge.s32.totalorder %v837, 2
        %vm862 = vcmp.ge.s32.totalorder %v838, 2
        %vm863 = vcmp.ge.s32.totalorder %v839, 2
        %vm864 = vcmp.ge.s32.totalorder %v840, 2
        %vm865 = vmand %vm853, %vm859
        %vm866 = vmand %vm854, %vm860
        %vm867 = vmand %vm855, %vm861
        %vm868 = vmand %vm856, %vm862
        %vm869 = vmand %vm857, %vm863
        %vm870 = vmand %vm858, %vm864
        %vm871 = vcmp.lt.s32.totalorder %v835, 18
        %vm872 = vcmp.lt.s32.totalorder %v836, 18
        %vm873 = vcmp.lt.s32.totalorder %v837, 18
        %vm874 = vcmp.lt.s32.totalorder %v838, 18
        %vm875 = vcmp.lt.s32.totalorder %v839, 18
        %vm876 = vcmp.lt.s32.totalorder %v840, 18
        %vm877 = vmand %vm865, %vm871
        %vm878 = vmand %vm866, %vm872
        %vm879 = vmand %vm867, %vm873
        %vm880 = vmand %vm868, %vm874
        %vm881 = vmand %vm869, %vm875
        %vm882 = vmand %vm870, %vm876
        %v883 = vsel %vm877, %v810, 0.0
        %v884 = vsel %vm878, %v811, 0.0
        %v885 = vsel %vm879, %v812, 0.0
        %v886 = vsel %vm880, %v813, 0.0
        %v887 = vsel %vm881, %v814, 0.0
        %v888 = vsel %vm882, %v815, 0.0
        %v889 = vpack.c.bf16 %v883, %v883
        %v890 = vpack.c.bf16 %v884, %v884
        %v891 = vpack.c.bf16 %v885, %v885
        %v892 = vpack.c.bf16 %v886, %v886
        %v893 = vpack.c.bf16 %v887, %v887
        %v894 = vpack.c.bf16 %v888, %v888
        %v901 = vrot.slane %v889, 6
        %v902 = vrot.slane %v890, 6
        %v903 = vrot.slane %v891, 6
        %v904 = vrot.slane %v892, 6
        %v905 = vrot.slane %v893, 6
        %v906 = vrot.slane %v894, 6
        %907 = vrot.lane.b32.xlu0 %v901, 127
        %v908 = vpop.permute.xlu0 %907
        %909 = vrot.lane.b32.xlu0 %v902, 127
        %v910 = vpop.permute.xlu0 %909
        %911 = vrot.lane.b32.xlu0 %v903, 127
        %v912 = vpop.permute.xlu0 %911
        %913 = vrot.lane.b32.xlu0 %v904, 127
        %v914 = vpop.permute.xlu0 %913
        %915 = vrot.lane.b32.xlu0 %v905, 127
        %v916 = vpop.permute.xlu0 %915
        %917 = vrot.lane.b32.xlu0 %v906, 127
        %v918 = vpop.permute.xlu0 %917
        %v919 = vsel %vm290, %v908, %v910
        %v920 = vsel %vm290, %v910, %v912
        %v921 = vsel %vm290, %v912, %v914
        %v922 = vsel %vm290, %v914, %v916
        %v923 = vsel %vm290, %v916, %v918
        %v924 = vrot.slane %v889, 4
        %v925 = vrot.slane %v890, 4
        %v926 = vrot.slane %v891, 4
        %v927 = vrot.slane %v892, 4
        %v928 = vrot.slane %v893, 4
        %v929 = vrot.slane %v894, 4
        %930 = vrot.lane.b32.xlu0 %v924, 126
        %v931 = vpop.permute.xlu0 %930
        %932 = vrot.lane.b32.xlu0 %v925, 126
        %v933 = vpop.permute.xlu0 %932
        %934 = vrot.lane.b32.xlu0 %v926, 126
        %v935 = vpop.permute.xlu0 %934
        %936 = vrot.lane.b32.xlu0 %v927, 126
        %v937 = vpop.permute.xlu0 %936
        %938 = vrot.lane.b32.xlu0 %v928, 126
        %v939 = vpop.permute.xlu0 %938
        %940 = vrot.lane.b32.xlu0 %v929, 126
        %v941 = vpop.permute.xlu0 %940
        %v942 = vsel %vm318, %v931, %v933
        %v943 = vsel %vm318, %v933, %v935
        %v944 = vsel %vm318, %v935, %v937
        %v945 = vsel %vm318, %v937, %v939
        %v946 = vsel %vm318, %v939, %v941
        %v947 = vrot.slane %v889, 2
        %v948 = vrot.slane %v890, 2
        %v949 = vrot.slane %v891, 2
        %v950 = vrot.slane %v892, 2
        %v951 = vrot.slane %v893, 2
        %v952 = vrot.slane %v894, 2
        %953 = vrot.lane.b32.xlu0 %v947, 96
        %v954 = vpop.permute.xlu0 %953
        %955 = vrot.lane.b32.xlu0 %v948, 96
        %v956 = vpop.permute.xlu0 %955
        %957 = vrot.lane.b32.xlu0 %v949, 96
        %v958 = vpop.permute.xlu0 %957
        %959 = vrot.lane.b32.xlu0 %v950, 96
        %v960 = vpop.permute.xlu0 %959
        %961 = vrot.lane.b32.xlu0 %v951, 96
        %v962 = vpop.permute.xlu0 %961
        %963 = vrot.lane.b32.xlu0 %v952, 96
        %v964 = vpop.permute.xlu0 %963
        %v965 = vsel %vm346, %v954, %v956
        %v966 = vsel %vm346, %v956, %v958
        %v967 = vsel %vm346, %v958, %v960
        %v968 = vsel %vm346, %v960, %v962
        %v969 = vsel %vm346, %v962, %v964
        %970 = vrot.lane.b32.xlu0 %v889, 95
        %v971 = vpop.permute.xlu0 %970
        %972 = vrot.lane.b32.xlu0 %v890, 95
        %v973 = vpop.permute.xlu0 %972
        %974 = vrot.lane.b32.xlu0 %v891, 95
        %v975 = vpop.permute.xlu0 %974
        %976 = vrot.lane.b32.xlu0 %v892, 95
        %v977 = vpop.permute.xlu0 %976
        %978 = vrot.lane.b32.xlu0 %v893, 95
        %v979 = vpop.permute.xlu0 %978
        %980 = vrot.lane.b32.xlu0 %v894, 95
        %v981 = vpop.permute.xlu0 %980
        %v982 = vsel %vm367, %v971, %v973
        %v983 = vsel %vm367, %v973, %v975
        %v984 = vsel %vm367, %v975, %v977
        %v985 = vsel %vm367, %v977, %v979
        %v986 = vsel %vm367, %v979, %v981
        %987 = vrot.lane.b32.xlu0 %v901, 94
        %v988 = vpop.permute.xlu0 %987
        %989 = vrot.lane.b32.xlu0 %v902, 94
        %v990 = vpop.permute.xlu0 %989
        %991 = vrot.lane.b32.xlu0 %v903, 94
        %v992 = vpop.permute.xlu0 %991
        %993 = vrot.lane.b32.xlu0 %v904, 94
        %v994 = vpop.permute.xlu0 %993
        %995 = vrot.lane.b32.xlu0 %v905, 94
        %v996 = vpop.permute.xlu0 %995
        %997 = vrot.lane.b32.xlu0 %v906, 94
        %v998 = vpop.permute.xlu0 %997
        %v999 = vsel %vm388, %v988, %v990
        %v1000 = vsel %vm388, %v990, %v992
        %v1001 = vsel %vm388, %v992, %v994
        %v1002 = vsel %vm388, %v994, %v996
        %v1003 = vsel %vm388, %v996, %v998
        %1004 = vrot.lane.b32.xlu0 %v924, 64
        %v1005 = vpop.permute.xlu0 %1004
        %1006 = vrot.lane.b32.xlu0 %v925, 64
        %v1007 = vpop.permute.xlu0 %1006
        %1008 = vrot.lane.b32.xlu0 %v926, 64
        %v1009 = vpop.permute.xlu0 %1008
        %1010 = vrot.lane.b32.xlu0 %v927, 64
        %v1011 = vpop.permute.xlu0 %1010
        %1012 = vrot.lane.b32.xlu0 %v928, 64
        %v1013 = vpop.permute.xlu0 %1012
        %1014 = vrot.lane.b32.xlu0 %v929, 64
        %v1015 = vpop.permute.xlu0 %1014
        %v1016 = vsel %vm409, %v1005, %v1007
        %v1017 = vsel %vm409, %v1007, %v1009
        %v1018 = vsel %vm409, %v1009, %v1011
        %v1019 = vsel %vm409, %v1011, %v1013
        %v1020 = vsel %vm409, %v1013, %v1015
        %1021 = vrot.lane.b32.xlu0 %v947, 63
        %v1022 = vpop.permute.xlu0 %1021
        %1023 = vrot.lane.b32.xlu0 %v948, 63
        %v1024 = vpop.permute.xlu0 %1023
        %1025 = vrot.lane.b32.xlu0 %v949, 63
        %v1026 = vpop.permute.xlu0 %1025
        %1027 = vrot.lane.b32.xlu0 %v950, 63
        %v1028 = vpop.permute.xlu0 %1027
        %1029 = vrot.lane.b32.xlu0 %v951, 63
        %v1030 = vpop.permute.xlu0 %1029
        %1031 = vrot.lane.b32.xlu0 %v952, 63
        %v1032 = vpop.permute.xlu0 %1031
        %v1033 = vsel %vm430, %v1022, %v1024
        %v1034 = vsel %vm430, %v1024, %v1026
        %v1035 = vsel %vm430, %v1026, %v1028
        %v1036 = vsel %vm430, %v1028, %v1030
        %v1037 = vsel %vm430, %v1030, %v1032
        %1038 = vrot.lane.b32.xlu0 %v889, 62
        %v1039 = vpop.permute.xlu0 %1038
        %1040 = vrot.lane.b32.xlu0 %v890, 62
        %v1041 = vpop.permute.xlu0 %1040
        %1042 = vrot.lane.b32.xlu0 %v891, 62
        %v1043 = vpop.permute.xlu0 %1042
        %1044 = vrot.lane.b32.xlu0 %v892, 62
        %v1045 = vpop.permute.xlu0 %1044
        %1046 = vrot.lane.b32.xlu0 %v893, 62
        %v1047 = vpop.permute.xlu0 %1046
        %1048 = vrot.lane.b32.xlu0 %v894, 62
        %v1049 = vpop.permute.xlu0 %1048
        %v1050 = vsel %vm451, %v1039, %v1041
        %v1051 = vsel %vm451, %v1041, %v1043
        %v1052 = vsel %vm451, %v1043, %v1045
        %v1053 = vsel %vm451, %v1045, %v1047
        %v1054 = vsel %vm451, %v1047, %v1049
        %v1057 = vsel %vm458, %v889, %v919
        %v1060 = vsel %vm458, %v890, %v920
        %v1063 = vsel %vm458, %v891, %v921
        %v1066 = vsel %vm458, %v892, %v922
        %v1069 = vsel %vm458, %v893, %v923
        %v1072 = vsel %vm458, %v894, %v918
        %v1074 = vsel %vm480, %v1057, %v942
        %v1076 = vsel %vm480, %v1060, %v943
        %v1078 = vsel %vm480, %v1063, %v944
        %v1080 = vsel %vm480, %v1066, %v945
        %v1082 = vsel %vm480, %v1069, %v946
        %v1084 = vsel %vm480, %v1072, %v941
        %v1086 = vsel %vm495, %v1074, %v965
        %v1088 = vsel %vm495, %v1076, %v966
        %v1090 = vsel %vm495, %v1078, %v967
        %v1092 = vsel %vm495, %v1080, %v968
        %v1094 = vsel %vm495, %v1082, %v969
        %v1096 = vsel %vm495, %v1084, %v964
        %v1099 = vsel %vm458, %v982, %v999
        %v1102 = vsel %vm458, %v983, %v1000
        %v1105 = vsel %vm458, %v984, %v1001
        %v1108 = vsel %vm458, %v985, %v1002
        %v1111 = vsel %vm458, %v986, %v1003
        %v1114 = vsel %vm458, %v981, %v998
        %v1116 = vsel %vm480, %v1099, %v1016
        %v1118 = vsel %vm480, %v1102, %v1017
        %v1120 = vsel %vm480, %v1105, %v1018
        %v1122 = vsel %vm480, %v1108, %v1019
        %v1124 = vsel %vm480, %v1111, %v1020
        %v1126 = vsel %vm480, %v1114, %v1015
        %v1128 = vsel %vm495, %v1116, %v1033
        %v1130 = vsel %vm495, %v1118, %v1034
        %v1132 = vsel %vm495, %v1120, %v1035
        %v1134 = vsel %vm495, %v1122, %v1036
        %v1136 = vsel %vm495, %v1124, %v1037
        %v1138 = vsel %vm495, %v1126, %v1032
        %v1139 = vld [vmem:[%s3] sm:$0x3]
        %v1140 = vld [vmem:[%s4] sm:$0xf]
        %1142 = vset.pattern.permute.xlu0 0
        %1143 = vperm.xlu0 %1142, %v1140
        %v1144 = vpop.permute.xlu0 %1143
        %1158 = vrot.lane.b32.xlu0 %v1086, 97
        %v1159 = vpop.permute.xlu0 %1158
        %1160 = vrot.lane.b32.xlu0 %v1088, 97
        %v1161 = vpop.permute.xlu0 %1160
        %1162 = vrot.lane.b32.xlu0 %v1090, 97
        %v1163 = vpop.permute.xlu0 %1162
        %1164 = vrot.lane.b32.xlu0 %v1092, 97
        %v1165 = vpop.permute.xlu0 %1164
        %1166 = vrot.lane.b32.xlu0 %v1094, 97
        %v1167 = vpop.permute.xlu0 %1166
        %1168 = vrot.lane.b32.xlu0 %v1096, 97
        %v1169 = vpop.permute.xlu0 %1168
        %1170 = vrot.lane.b32.xlu0 %v1128, 97
        %v1171 = vpop.permute.xlu0 %1170
        %1172 = vrot.lane.b32.xlu0 %v1130, 97
        %v1173 = vpop.permute.xlu0 %1172
        %1174 = vrot.lane.b32.xlu0 %v1132, 97
        %v1175 = vpop.permute.xlu0 %1174
        %1176 = vrot.lane.b32.xlu0 %v1134, 97
        %v1177 = vpop.permute.xlu0 %1176
        %1178 = vrot.lane.b32.xlu0 %v1136, 97
        %v1179 = vpop.permute.xlu0 %1178
        %1180 = vrot.lane.b32.xlu0 %v1138, 97
        %v1181 = vpop.permute.xlu0 %1180
        %1182 = vrot.lane.b32.xlu0 %v1050, 97
        %v1183 = vpop.permute.xlu0 %1182
        %1184 = vrot.lane.b32.xlu0 %v1051, 97
        %v1185 = vpop.permute.xlu0 %1184
        %1186 = vrot.lane.b32.xlu0 %v1052, 97
        %v1187 = vpop.permute.xlu0 %1186
        %1188 = vrot.lane.b32.xlu0 %v1053, 97
        %v1189 = vpop.permute.xlu0 %1188
        %1190 = vrot.lane.b32.xlu0 %v1054, 97
        %v1191 = vpop.permute.xlu0 %1190
        %1192 = vrot.lane.b32.xlu0 %v1049, 97
        %v1193 = vpop.permute.xlu0 %1192
        %v1194 = vsel %vm622, %v1159, %v1161
        %v1195 = vsel %vm622, %v1161, %v1163
        %v1196 = vsel %vm622, %v1163, %v1165
        %v1197 = vsel %vm622, %v1165, %v1167
        %v1198 = vsel %vm622, %v1167, %v1169
        %v1199 = vsel %vm622, %v1171, %v1173
        %v1200 = vsel %vm622, %v1173, %v1175
        %v1201 = vsel %vm622, %v1175, %v1177
        %v1202 = vsel %vm622, %v1177, %v1179
        %v1203 = vsel %vm622, %v1179, %v1181
        %v1204 = vsel %vm622, %v1183, %v1185
        %v1205 = vsel %vm622, %v1185, %v1187
        %v1206 = vsel %vm622, %v1187, %v1189
        %v1207 = vsel %vm622, %v1189, %v1191
        %v1208 = vsel %vm622, %v1191, %v1193
        %v1220 = vsel %vm653, %v1139, 0
        %v1223 = vsel %vm458, %v1204, 0
        %v1226 = vsel %vm458, %v1205, 0
        %v1229 = vsel %vm458, %v1206, 0
        %v1232 = vsel %vm458, %v1207, 0
        %v1235 = vsel %vm458, %v1208, 0
        %1237 = vmatprep.subr.bf16.mxu0 0
        %1238 = vmatpush1.bf16.msra.mxu0 0
        %1239 = vmatprep.subr.bf16.mxu0 0
        %1240 = vmatpush1.bf16.msra.mxu0 0
        %1241 = vmatprep.subr.bf16.mxu0 0
        %1242 = vmatpush1.bf16.msra.mxu0 0
        %1243 = vmatprep.subr.bf16.mxu0 0
        %1244 = vmatpush1.bf16.msra.mxu0 0
        %1245 = vmatprep.subr.bf16.mxu0 0
        %1246 = vmatpush1.bf16.msra.mxu0 0
        %1247 = vmatprep.subr.bf16.mxu0 %v1226
        %1248 = vmatpush1.bf16.msra.mxu0 %v1223
        %1249 = vmatprep.subr.bf16.mxu0 %v1200
        %1250 = vmatpush1.bf16.msra.mxu0 %v1199
        %1251 = vmatprep.subr.bf16.mxu0 %v1195
        %1252 = vmatpush1.bf16.msra.mxu0 %v1194
        %1253 = vmatprep.subr.bf16.mxu0 0
        %1254 = vmatpush2.bf16.msra.mxu0 0
        %1255 = vmatprep.subr.bf16.mxu0 0
        %1256 = vmatpush2.bf16.msra.mxu0 0
        %1257 = vmatprep.subr.bf16.mxu0 0
        %1258 = vmatpush2.bf16.msra.mxu0 0
        %1259 = vmatprep.subr.bf16.mxu0 0
        %1260 = vmatpush2.bf16.msra.mxu0 0
        %1261 = vmatprep.subr.bf16.mxu0 0
        %1262 = vmatpush2.bf16.msra.mxu0 0
        %1263 = vmatprep.subr.bf16.mxu0 0
        %1264 = vmatpush2.bf16.msra.mxu0 0
        %1265 = vmatprep.subr.bf16.mxu0 0
        %1266 = vmatpush2.bf16.msra.mxu0 0
        %1267 = vmatprep.subr.bf16.mxu0 0
        %1268 = vmatpush2.bf16.msra.mxu0 0
        %1269 = vmatprep.mubr.bf16.mxu0 0
        %1270 = vmatmul.mubr.bf16.gmra.mxu0 %v1220
        %v1271 = vpop.f32.mrf.mxu0
        %v1272 = vadd.f32 %v1144, %v1271
        %v1273 = vpop.f32.mrf.mxu0
        %v1274 = vadd.f32 %v1144, %v1273
        %v1275 = vpop.f32.mrf.mxu0
        %v1276 = vpop.f32.mrf.mxu0
        %1277 = vdwg.mxu0
        %1278 = vmatprep.subr.bf16.mxu0 0
        %1279 = vmatpush1.bf16.msra.mxu0 0
        %1280 = vmatprep.subr.bf16.mxu0 0
        %1281 = vmatpush1.bf16.msra.mxu0 0
        %1282 = vmatprep.subr.bf16.mxu0 0
        %1283 = vmatpush1.bf16.msra.mxu0 0
        %1284 = vmatprep.subr.bf16.mxu0 0
        %1285 = vmatpush1.bf16.msra.mxu0 0
        %1286 = vmatprep.subr.bf16.mxu0 0
        %1287 = vmatpush1.bf16.msra.mxu0 0
        %1288 = vmatprep.subr.bf16.mxu0 %v1232
        %1289 = vmatpush1.bf16.msra.mxu0 %v1229
        %1290 = vmatprep.subr.bf16.mxu0 %v1202
        %1291 = vmatpush1.bf16.msra.mxu0 %v1201
        %1292 = vmatprep.subr.bf16.mxu0 %v1197
        %1293 = vmatpush1.bf16.msra.mxu0 %v1196
        %1294 = vmatprep.subr.bf16.mxu0 0
        %1295 = vmatpush2.bf16.msra.mxu0 0
        %1296 = vmatprep.subr.bf16.mxu0 0
        %1297 = vmatpush2.bf16.msra.mxu0 0
        %1298 = vmatprep.subr.bf16.mxu0 0
        %1299 = vmatpush2.bf16.msra.mxu0 0
        %1300 = vmatprep.subr.bf16.mxu0 0
        %1301 = vmatpush2.bf16.msra.mxu0 0
        %1302 = vmatprep.subr.bf16.mxu0 0
        %1303 = vmatpush2.bf16.msra.mxu0 0
        %1304 = vmatprep.subr.bf16.mxu0 0
        %1305 = vmatpush2.bf16.msra.mxu0 0
        %1306 = vmatprep.subr.bf16.mxu0 0
        %1307 = vmatpush2.bf16.msra.mxu0 0
        %1308 = vmatprep.subr.bf16.mxu0 0
        %1309 = vmatpush2.bf16.msra.mxu0 0
        %1310 = vmatprep.mubr.bf16.mxu0 0
        %1311 = vmatmul.mubr.bf16.gmra.mxu0 %v1220
        %v1312 = vpop.f32.mrf.mxu0
        %v1313 = vadd.f32 %v1144, %v1312
        %v1314 = vpop.f32.mrf.mxu0
        %v1315 = vadd.f32 %v1144, %v1314
        %v1316 = vpop.f32.mrf.mxu0
        %v1317 = vpop.f32.mrf.mxu0
        %1318 = vdwg.mxu0
        %1319 = vmatprep.subr.bf16.mxu0 0
        %1320 = vmatpush1.bf16.msra.mxu0 0
        %1321 = vmatprep.subr.bf16.mxu0 0
        %1322 = vmatpush1.bf16.msra.mxu0 0
        %1323 = vmatprep.subr.bf16.mxu0 0
        %1324 = vmatpush1.bf16.msra.mxu0 0
        %1325 = vmatprep.subr.bf16.mxu0 0
        %1326 = vmatpush1.bf16.msra.mxu0 0
        %1327 = vmatprep.subr.bf16.mxu0 0
        %1328 = vmatpush1.bf16.msra.mxu0 0
        %1329 = vmatprep.subr.bf16.mxu0 0
        %1330 = vmatpush1.bf16.msra.mxu0 %v1235
        %1331 = vmatprep.subr.bf16.mxu0 0
        %1332 = vmatpush1.bf16.msra.mxu0 %v1203
        %1333 = vmatprep.subr.bf16.mxu0 0
        %1334 = vmatpush1.bf16.msra.mxu0 %v1198
        %1335 = vmatprep.subr.bf16.mxu0 0
        %1336 = vmatpush2.bf16.msra.mxu0 0
        %1337 = vmatprep.subr.bf16.mxu0 0
        %1338 = vmatpush2.bf16.msra.mxu0 0
        %1339 = vmatprep.subr.bf16.mxu0 0
        %1340 = vmatpush2.bf16.msra.mxu0 0
        %1341 = vmatprep.subr.bf16.mxu0 0
        %1342 = vmatpush2.bf16.msra.mxu0 0
        %1343 = vmatprep.subr.bf16.mxu0 0
        %1344 = vmatpush2.bf16.msra.mxu0 0
        %1345 = vmatprep.subr.bf16.mxu0 0
        %1346 = vmatpush2.bf16.msra.mxu0 0
        %1347 = vmatprep.subr.bf16.mxu0 0
        %1348 = vmatpush2.bf16.msra.mxu0 0
        %1349 = vmatprep.subr.bf16.mxu0 0
        %1350 = vmatpush2.bf16.msra.mxu0 0
        %1351 = vmatprep.mubr.bf16.mxu0 0
        %1352 = vmatmul.mubr.bf16.gmra.mxu0 %v1220
        %v1353 = vpop.f32.mrf.mxu0
        %v1354 = vadd.f32 %v1144, %v1353
        %v1355 = vpop.f32.mrf.mxu0
        %v1356 = vpop.f32.mrf.mxu0
        %v1357 = vpop.f32.mrf.mxu0
        %1358 = vdwg.mxu0
        %vm1359 = vcmp.ge.f32.partialorder %v1272, 0.0
        %vm1360 = vcmp.ge.f32.partialorder %v1274, 0.0
        %vm1361 = vcmp.ge.f32.partialorder %v1313, 0.0
        %vm1362 = vcmp.ge.f32.partialorder %v1315, 0.0
        %vm1363 = vcmp.ge.f32.partialorder %v1354, 0.0
        %v1364 = vmul.f32 %v1272, 0.2
        %v1365 = vmul.f32 %v1274, 0.2
        %v1366 = vmul.f32 %v1313, 0.2
        %v1367 = vmul.f32 %v1315, 0.2
        %v1368 = vmul.f32 %v1354, 0.2
        %v1369 = vsel %vm1359, %v1272, %v1364
        %v1370 = vsel %vm1360, %v1274, %v1365
        %v1371 = vsel %vm1361, %v1313, %v1366
        %v1372 = vsel %vm1362, %v1315, %v1367
        %v1373 = vsel %vm1363, %v1354, %v1368
        %v1374 = vadd.f32 %v1369, %v249
        %v1375 = vadd.f32 %v1370, %v243
        %v1376 = vadd.f32 %v1371, %v250
        %v1377 = vadd.f32 %v1372, %v244
        %v1378 = vadd.f32 %v1373, %v251
        %v1383 = vcombine.low %v1374, %v1375
        %v1384 = vcombine.low %v1376, %v1377
        %1387 = vst [vmem:[%s240] sm:$0xff] %v1383
        %1388 = vst [vmem:[%s240 + $0x8] sm:$0xff] %v1384
        %1389 = vst [vmem:[%s240 + $0x10] sm:$0xf] %v1378
        %s1390 = sand.u32 %s140, 1
        %s1391 = scalar_lea.sflag [#allocation4], %s1390
        %s1392 = sand.u32 %s140, 1
        %s1393 = smul.addr %s1392, 20
        %s1394 = scalar_lea.vmem [#allocation5], %s1393
        // Predicated region
        $region45: #{tpu_custom_call.1} parent=39 // pred_check
          %p1395 = pneg %p150
        $region46: #{tpu_custom_call.1} parent=39 // pred_check_branch
          %1397 = sbr.rel (%p1395) target = $region48
        $region47: #{tpu_custom_call.1} parent=39 // pred_region
          %s1399 = ssub.s32 320, 320
          %1400 = vsyncadd %s1391, %s1399
          %s1401 = smul.addr %s22, 5
          %s1402 = smul.addr %s1401, 64
          %s1403 = scalar_lea.hbm %s5, %s1402
          %s1405 = sshll.u32 %s1394, 4
          %s1406 = int_to_ptr.vmem [resolvable:$true] %s1405
          %1408 = dma.vmem_to_hbm [thread:$0]  %s1406, 320, %s1403, %s1391
        $region48: #{tpu_custom_call.1} parent=39 // pred_fallthru
          _
      $region40: #{tpu_custom_call.1} parent=5 // pred_fallthru
        _
      %p1409 = scmp.le.s32.totalorder 2, %s17
      // Predicated region
      $region49: #{tpu_custom_call.1} parent=5 // pred_check
        %p1410 = pneg %p1409
      $region50: #{tpu_custom_call.1} parent=5 // pred_check_branch
        %1412 = sbr.rel (%p1410) target = $region52
      $region51: #{tpu_custom_call.1} parent=5 // pred_region
        %s1413 = ssub.s32 %s17, 2
        // Predicated region
        $region53: #{tpu_custom_call.1} parent=51 // pred_check
          %p1414 = pneg %p156
        $region54: #{tpu_custom_call.1} parent=51 // pred_check_branch
          %1416 = sbr.rel (%p1414) target = $region56
        $region55: #{tpu_custom_call.1} parent=51 // pred_region
          %s1417 = sand.u32 %s141, 1
          %s1418 = scalar_lea.sflag [#allocation4], %s1417
          %s1419 = sand.u32 %s141, 1
          %s1420 = smul.addr %s1419, 20
          %s1421 = scalar_lea.vmem [#allocation5], %s1420
          %1422 = dma.done %s1418, 320
        $region56: #{tpu_custom_call.1} parent=51 // pred_fallthru
          _
      $region52: #{tpu_custom_call.1} parent=5 // pred_fallthru
        _
    $region6: #{tpu_custom_call.1} parent=1 // loop_footer
      %s21 = sadd.s32 1, %s17
    $region7: #{tpu_custom_call.1} parent=1 // loop_footer_branch
      %16 = sbr.rel target = $region3
    $region8: #{tpu_custom_call.1} parent=1 // loop_exit
      _
    %1423 = vsyncpa [#allocation3], 1
    %s1424 = scalar_lea.sflag [#allocation3], 1
    %1425 = vsyncpa %s1424, 1
    %1426 = vsyncpa [#allocation4], 1
    %s1427 = scalar_lea.sflag [#allocation4], 1
    %1428 = vsyncpa %s1427, 1

</llo_original>
